<compile_context>
chip_gen: v6e
topology: v6e:2x2x1
jax: 0.10.0
libtpu: 0.0.40
codegen_flags: <defaults>
</compile_context>

<pallas_src>
import functools

import jax
import jax.numpy as jnp
from jax.experimental import pallas as pl
from jax.experimental.pallas import tpu as pltpu


# Sublane rows per grid step once N is large: 512x128 f32 = 256 KiB per buffer,
# comfortably double-bufferable inside v7x's 32 MiB scoped-VMEM default.
_BLOCK_S = 512


def _mlp_kernel(params_ref, x_ref, o_ref, *, h_dim):
    """One (block_s, 128) batch tile of predict(relu(hidden(x))).

    params_ref : SMEM (3*H + 1,) f32 = [w1 (H) | b1 (H) | w2 (H) | b2 (1)]
    x_ref      : VMEM (block_s, 128) f32 -- batch packed dense in sublanes+lanes
    o_ref      : VMEM (block_s, 128) f32

    Pure VPU work:  y = sum_j relu(w1[j]*x + b1[j]) * w2[j] + b2
    (scalar weights broadcast from SMEM; no MXU, no XLU reduction, no (H, N)
    intermediate — only ~3 live vregs per tile.)
    """
    x = x_ref[...]
    acc = jnp.zeros_like(x)
    for j in range(h_dim):                      # static unroll; H is small (10)
        w1j = params_ref[j]
        b1j = params_ref[h_dim + j]
        w2j = params_ref[2 * h_dim + j]
        acc = acc + jnp.maximum(x * w1j + b1j, 0.0) * w2j
    o_ref[...] = acc + params_ref[3 * h_dim]    # + b2


@jax.jit
def net_forward(x, w1, b1, w2, b2):
    """Pallas equivalent of Net.forward: predict(relu(hidden(x))).

    x:  (N, 1) float32
    w1: (H, 1) float32   (PyTorch hidden.weight)
    b1: (H,)   float32
    w2: (1, H) float32   (PyTorch predict.weight)
    b2: (1,)   float32
    returns (N, 1) float32
    """
    n, f = x.shape
    h_dim = w1.shape[0]
    o_dim = w2.shape[0]
    assert f == 1 and o_dim == 1, "kernel specializes the tutorial shapes (F=1, O=1)"

    # --- Pack the batch dense in sublanes AND lanes: (S, 128), S = ceil(N/128). ---
    s = pl.cdiv(n, 128)
    if s <= _BLOCK_S:
        block_s = s                        # single block == full array (exempt from 8x128 rule)
    else:
        block_s = _BLOCK_S                 # tile the sublane axis; 512 % 8 == 0
        s = pl.cdiv(s, _BLOCK_S) * _BLOCK_S
    n_pad = s * 128
    num_blocks = s // block_s

    # Padded tail lanes compute relu(b1)*w2 + b2 (garbage) but are sliced off below;
    # never reduce over / reuse the padded kernel output directly.
    x_blk = jnp.pad(x[:, 0].astype(jnp.float32), (0, n_pad - n)).reshape(s, 128)

    # --- Pack all parameters into one small 1-D SMEM array (1 DMA, ~128 B). ---
    params = jnp.concatenate(
        [w1.reshape(-1), b1.reshape(-1), w2.reshape(-1), b2.reshape(-1)]
    ).astype(jnp.float32)                  # (3*H + 1,)

    out_blk = pl.pallas_call(
        functools.partial(_mlp_kernel, h_dim=h_dim),
        out_shape=jax.ShapeDtypeStruct((s, 128), jnp.float32),
        grid=(num_blocks,),
        in_specs=[
            # Whole parameter vector resident in SMEM for every grid step.
            pl.BlockSpec(memory_space=pltpu.MemorySpace.SMEM),
            pl.BlockSpec((block_s, 128), lambda i: (i, 0)),
        ],
        out_specs=pl.BlockSpec((block_s, 128), lambda i: (i, 0)),
        compiler_params=pltpu.CompilerParams(
            dimension_semantics=("parallel",),   # lets v7x's 2 TCs split large batches
        ),
        cost_estimate=pl.CostEstimate(
            flops=5 * h_dim * n_pad + n_pad,
            transcendentals=0,
            bytes_accessed=2 * 4 * n_pad + 4 * (3 * h_dim + 1),
        ),
    )(params, x_blk)

    # Un-pack (S, 128) -> (N, 1); fuses with the kernel under jit.
    return out_blk.reshape(-1)[:n].reshape(n, 1)


def init_params(key, n_feature, n_hidden, n_output):
    """Deterministic PyTorch-style (uniform +/- 1/sqrt(fan_in)) init, PyTorch shapes."""
    k1, k2, k3, k4 = jax.random.split(key, 4)
    bound1 = 1.0 / jnp.sqrt(jnp.float32(n_feature))
    bound2 = 1.0 / jnp.sqrt(jnp.float32(n_hidden))
    w1 = jax.random.uniform(k1, (n_hidden, n_feature), jnp.float32, -bound1, bound1)
    b1 = jax.random.uniform(k2, (n_hidden,), jnp.float32, -bound1, bound1)
    w2 = jax.random.uniform(k3, (n_output, n_hidden), jnp.float32, -bound2, bound2)
    b2 = jax.random.uniform(k4, (n_output,), jnp.float32, -bound2, bound2)
    return w1, b1, w2, b2


if __name__ == "__main__":
    # Mirror the tutorial: x = unsqueeze(linspace(-1, 1, 100), dim=1) -> (100, 1)
    n_feature, n_hidden, n_output = 1, 10, 1
    x = jnp.linspace(-1.0, 1.0, 100, dtype=jnp.float32).reshape(-1, 1)

    key = jax.random.PRNGKey(0)
    w1, b1, w2, b2 = init_params(key, n_feature, n_hidden, n_output)

    out = net_forward(x, w1, b1, w2, b2)
    out = jax.block_until_ready(out)

    # Pure-JAX reference of the PyTorch forward semantics.
    ref = jnp.maximum(x @ w1.T + b1, 0.0) @ w2.T + b2
    assert out.shape == (100, 1)
    assert jnp.allclose(out, ref, atol=1e-5, rtol=1e-5)

    print("KERNEL_OK")
</pallas_src>

<mosaic_0001>
module attributes {stable_mosaic.version = 11 : i64} {
  func.func @_mlp_kernel(%arg0: i32, %arg1: memref<31xf32, #tpu.memory_space<smem>>, %arg2: memref<1x128xf32, #tpu.memory_space<vmem>>, %arg3: memref<1x128xf32, #tpu.memory_space<vmem>>) attributes {dimension_semantics = [#tpu.dimension_semantics<parallel>], iteration_bounds = array<i64: 1>, scalar_prefetch = 0 : i64, scratch_operands = 0 : i64, tpu.core_type = #tpu.core_type<tc>, window_params = [{transform_indices = @transform_0, window_bounds = array<i64: 31>}, {transform_indices = @transform_1, window_bounds = array<i64: 1, 128>}, {transform_indices = @transform_2, window_bounds = array<i64: 1, 128>}]} {
    %c0 = arith.constant 0 : index
    %c0_0 = arith.constant 0 : index
    %0 = vector.load %arg2[%c0, %c0_0] : memref<1x128xf32, #tpu.memory_space<vmem>>, vector<1x128xf32>
    %cst = arith.constant 0.000000e+00 : f32
    %1 = vector.broadcast %cst : f32 to vector<1x128xf32>
    %c0_1 = arith.constant 0 : index
    %2 = memref.load %arg1[%c0_1] : memref<31xf32, #tpu.memory_space<smem>>
    %c10 = arith.constant 10 : index
    %3 = memref.load %arg1[%c10] : memref<31xf32, #tpu.memory_space<smem>>
    %c20 = arith.constant 20 : index
    %4 = memref.load %arg1[%c20] : memref<31xf32, #tpu.memory_space<smem>>
    %5 = vector.broadcast %2 : f32 to vector<1x128xf32>
    %6 = arith.mulf %0, %5 : vector<1x128xf32>
    %7 = vector.broadcast %3 : f32 to vector<1x128xf32>
    %8 = arith.addf %6, %7 : vector<1x128xf32>
    %cst_2 = arith.constant 0.000000e+00 : f32
    %9 = vector.broadcast %cst_2 : f32 to vector<1x128xf32>
    %10 = arith.maximumf %8, %9 : vector<1x128xf32>
    %11 = vector.broadcast %4 : f32 to vector<1x128xf32>
    %12 = arith.mulf %10, %11 : vector<1x128xf32>
    %13 = arith.addf %1, %12 : vector<1x128xf32>
    %c1 = arith.constant 1 : index
    %14 = memref.load %arg1[%c1] : memref<31xf32, #tpu.memory_space<smem>>
    %c11 = arith.constant 11 : index
    %15 = memref.load %arg1[%c11] : memref<31xf32, #tpu.memory_space<smem>>
    %c21 = arith.constant 21 : index
    %16 = memref.load %arg1[%c21] : memref<31xf32, #tpu.memory_space<smem>>
    %17 = vector.broadcast %14 : f32 to vector<1x128xf32>
    %18 = arith.mulf %0, %17 : vector<1x128xf32>
    %19 = vector.broadcast %15 : f32 to vector<1x128xf32>
    %20 = arith.addf %18, %19 : vector<1x128xf32>
    %cst_3 = arith.constant 0.000000e+00 : f32
    %21 = vector.broadcast %cst_3 : f32 to vector<1x128xf32>
    %22 = arith.maximumf %20, %21 : vector<1x128xf32>
    %23 = vector.broadcast %16 : f32 to vector<1x128xf32>
    %24 = arith.mulf %22, %23 : vector<1x128xf32>
    %25 = arith.addf %13, %24 : vector<1x128xf32>
    %c2 = arith.constant 2 : index
    %26 = memref.load %arg1[%c2] : memref<31xf32, #tpu.memory_space<smem>>
    %c12 = arith.constant 12 : index
    %27 = memref.load %arg1[%c12] : memref<31xf32, #tpu.memory_space<smem>>
    %c22 = arith.constant 22 : index
    %28 = memref.load %arg1[%c22] : memref<31xf32, #tpu.memory_space<smem>>
    %29 = vector.broadcast %26 : f32 to vector<1x128xf32>
    %30 = arith.mulf %0, %29 : vector<1x128xf32>
    %31 = vector.broadcast %27 : f32 to vector<1x128xf32>
    %32 = arith.addf %30, %31 : vector<1x128xf32>
    %cst_4 = arith.constant 0.000000e+00 : f32
    %33 = vector.broadcast %cst_4 : f32 to vector<1x128xf32>
    %34 = arith.maximumf %32, %33 : vector<1x128xf32>
    %35 = vector.broadcast %28 : f32 to vector<1x128xf32>
    %36 = arith.mulf %34, %35 : vector<1x128xf32>
    %37 = arith.addf %25, %36 : vector<1x128xf32>
    %c3 = arith.constant 3 : index
    %38 = memref.load %arg1[%c3] : memref<31xf32, #tpu.memory_space<smem>>
    %c13 = arith.constant 13 : index
    %39 = memref.load %arg1[%c13] : memref<31xf32, #tpu.memory_space<smem>>
    %c23 = arith.constant 23 : index
    %40 = memref.load %arg1[%c23] : memref<31xf32, #tpu.memory_space<smem>>
    %41 = vector.broadcast %38 : f32 to vector<1x128xf32>
    %42 = arith.mulf %0, %41 : vector<1x128xf32>
    %43 = vector.broadcast %39 : f32 to vector<1x128xf32>
    %44 = arith.addf %42, %43 : vector<1x128xf32>
    %cst_5 = arith.constant 0.000000e+00 : f32
    %45 = vector.broadcast %cst_5 : f32 to vector<1x128xf32>
    %46 = arith.maximumf %44, %45 : vector<1x128xf32>
    %47 = vector.broadcast %40 : f32 to vector<1x128xf32>
    %48 = arith.mulf %46, %47 : vector<1x128xf32>
    %49 = arith.addf %37, %48 : vector<1x128xf32>
    %c4 = arith.constant 4 : index
    %50 = memref.load %arg1[%c4] : memref<31xf32, #tpu.memory_space<smem>>
    %c14 = arith.constant 14 : index
    %51 = memref.load %arg1[%c14] : memref<31xf32, #tpu.memory_space<smem>>
    %c24 = arith.constant 24 : index
    %52 = memref.load %arg1[%c24] : memref<31xf32, #tpu.memory_space<smem>>
    %53 = vector.broadcast %50 : f32 to vector<1x128xf32>
    %54 = arith.mulf %0, %53 : vector<1x128xf32>
    %55 = vector.broadcast %51 : f32 to vector<1x128xf32>
    %56 = arith.addf %54, %55 : vector<1x128xf32>
    %cst_6 = arith.constant 0.000000e+00 : f32
    %57 = vector.broadcast %cst_6 : f32 to vector<1x128xf32>
    %58 = arith.maximumf %56, %57 : vector<1x128xf32>
    %59 = vector.broadcast %52 : f32 to vector<1x128xf32>
    %60 = arith.mulf %58, %59 : vector<1x128xf32>
    %61 = arith.addf %49, %60 : vector<1x128xf32>
    %c5 = arith.constant 5 : index
    %62 = memref.load %arg1[%c5] : memref<31xf32, #tpu.memory_space<smem>>
    %c15 = arith.constant 15 : index
    %63 = memref.load %arg1[%c15] : memref<31xf32, #tpu.memory_space<smem>>
    %c25 = arith.constant 25 : index
    %64 = memref.load %arg1[%c25] : memref<31xf32, #tpu.memory_space<smem>>
    %65 = vector.broadcast %62 : f32 to vector<1x128xf32>
    %66 = arith.mulf %0, %65 : vector<1x128xf32>
    %67 = vector.broadcast %63 : f32 to vector<1x128xf32>
    %68 = arith.addf %66, %67 : vector<1x128xf32>
    %cst_7 = arith.constant 0.000000e+00 : f32
    %69 = vector.broadcast %cst_7 : f32 to vector<1x128xf32>
    %70 = arith.maximumf %68, %69 : vector<1x128xf32>
    %71 = vector.broadcast %64 : f32 to vector<1x128xf32>
    %72 = arith.mulf %70, %71 : vector<1x128xf32>
    %73 = arith.addf %61, %72 : vector<1x128xf32>
    %c6 = arith.constant 6 : index
    %74 = memref.load %arg1[%c6] : memref<31xf32, #tpu.memory_space<smem>>
    %c16 = arith.constant 16 : index
    %75 = memref.load %arg1[%c16] : memref<31xf32, #tpu.memory_space<smem>>
    %c26 = arith.constant 26 : index
    %76 = memref.load %arg1[%c26] : memref<31xf32, #tpu.memory_space<smem>>
    %77 = vector.broadcast %74 : f32 to vector<1x128xf32>
    %78 = arith.mulf %0, %77 : vector<1x128xf32>
    %79 = vector.broadcast %75 : f32 to vector<1x128xf32>
    %80 = arith.addf %78, %79 : vector<1x128xf32>
    %cst_8 = arith.constant 0.000000e+00 : f32
    %81 = vector.broadcast %cst_8 : f32 to vector<1x128xf32>
    %82 = arith.maximumf %80, %81 : vector<1x128xf32>
    %83 = vector.broadcast %76 : f32 to vector<1x128xf32>
    %84 = arith.mulf %82, %83 : vector<1x128xf32>
    %85 = arith.addf %73, %84 : vector<1x128xf32>
    %c7 = arith.constant 7 : index
    %86 = memref.load %arg1[%c7] : memref<31xf32, #tpu.memory_space<smem>>
    %c17 = arith.constant 17 : index
    %87 = memref.load %arg1[%c17] : memref<31xf32, #tpu.memory_space<smem>>
    %c27 = arith.constant 27 : index
    %88 = memref.load %arg1[%c27] : memref<31xf32, #tpu.memory_space<smem>>
    %89 = vector.broadcast %86 : f32 to vector<1x128xf32>
    %90 = arith.mulf %0, %89 : vector<1x128xf32>
    %91 = vector.broadcast %87 : f32 to vector<1x128xf32>
    %92 = arith.addf %90, %91 : vector<1x128xf32>
    %cst_9 = arith.constant 0.000000e+00 : f32
    %93 = vector.broadcast %cst_9 : f32 to vector<1x128xf32>
    %94 = arith.maximumf %92, %93 : vector<1x128xf32>
    %95 = vector.broadcast %88 : f32 to vector<1x128xf32>
    %96 = arith.mulf %94, %95 : vector<1x128xf32>
    %97 = arith.addf %85, %96 : vector<1x128xf32>
    %c8 = arith.constant 8 : index
    %98 = memref.load %arg1[%c8] : memref<31xf32, #tpu.memory_space<smem>>
    %c18 = arith.constant 18 : index
    %99 = memref.load %arg1[%c18] : memref<31xf32, #tpu.memory_space<smem>>
    %c28 = arith.constant 28 : index
    %100 = memref.load %arg1[%c28] : memref<31xf32, #tpu.memory_space<smem>>
    %101 = vector.broadcast %98 : f32 to vector<1x128xf32>
    %102 = arith.mulf %0, %101 : vector<1x128xf32>
    %103 = vector.broadcast %99 : f32 to vector<1x128xf32>
    %104 = arith.addf %102, %103 : vector<1x128xf32>
    %cst_10 = arith.constant 0.000000e+00 : f32
    %105 = vector.broadcast %cst_10 : f32 to vector<1x128xf32>
    %106 = arith.maximumf %104, %105 : vector<1x128xf32>
    %107 = vector.broadcast %100 : f32 to vector<1x128xf32>
    %108 = arith.mulf %106, %107 : vector<1x128xf32>
    %109 = arith.addf %97, %108 : vector<1x128xf32>
    %c9 = arith.constant 9 : index
    %110 = memref.load %arg1[%c9] : memref<31xf32, #tpu.memory_space<smem>>
    %c19 = arith.constant 19 : index
    %111 = memref.load %arg1[%c19] : memref<31xf32, #tpu.memory_space<smem>>
    %c29 = arith.constant 29 : index
    %112 = memref.load %arg1[%c29] : memref<31xf32, #tpu.memory_space<smem>>
    %113 = vector.broadcast %110 : f32 to vector<1x128xf32>
    %114 = arith.mulf %0, %113 : vector<1x128xf32>
    %115 = vector.broadcast %111 : f32 to vector<1x128xf32>
    %116 = arith.addf %114, %115 : vector<1x128xf32>
    %cst_11 = arith.constant 0.000000e+00 : f32
    %117 = vector.broadcast %cst_11 : f32 to vector<1x128xf32>
    %118 = arith.maximumf %116, %117 : vector<1x128xf32>
    %119 = vector.broadcast %112 : f32 to vector<1x128xf32>
    %120 = arith.mulf %118, %119 : vector<1x128xf32>
    %121 = arith.addf %109, %120 : vector<1x128xf32>
    %c30 = arith.constant 30 : index
    %122 = memref.load %arg1[%c30] : memref<31xf32, #tpu.memory_space<smem>>
    %123 = vector.broadcast %122 : f32 to vector<1x128xf32>
    %124 = arith.addf %121, %123 : vector<1x128xf32>
    %c0_12 = arith.constant 0 : index
    %c0_13 = arith.constant 0 : index
    %125 = vector.load %arg3[%c0_12, %c0_13] : memref<1x128xf32, #tpu.memory_space<vmem>>, vector<1x128xf32>
    tpu.vector_store %arg3[%c0_12, %c0_13], %124 {strides = array<i32>} : memref<1x128xf32, #tpu.memory_space<vmem>>, vector<1x128xf32>,
    return
  }
  func.func @transform_0(%arg0: i32) -> i32 {
    %c0_i32 = arith.constant 0 : i32
    %c0_i32_0 = arith.constant 0 : i32
    return %c0_i32 : i32
  }
  func.func @transform_1(%arg0: i32) -> (i32, i32) {
    %c0_i32 = arith.constant 0 : i32
    %c0_i32_0 = arith.constant 0 : i32
    return %arg0, %c0_i32 : i32, i32
  }
  func.func @transform_2(%arg0: i32) -> (i32, i32) {
    %c0_i32 = arith.constant 0 : i32
    %c0_i32_0 = arith.constant 0 : i32
    return %arg0, %c0_i32 : i32, i32
  }
}

</mosaic_0001>

<llo_original>
// kernel: net_forward.1
$region0: #{net_forward.1}
  #allocation0 [shape = 'u32[]', space=smem, size = 0x4, offset = 0x4, fixed_abs, tag = 'smem constant byte address 0x4 - core index']
  #allocation1 [shape = 'u32[144,128]{1,0:T(1,128)}', space=vmem, size = 0x12000, scoped, tag = 'internal scratch']
  %s0 = inlined_call_operand.vmem [shape: f32[31], index: 0, kind: input, shape index: {}]
  %s1 = inlined_call_operand.vmem [shape: f32[1,128], index: 1, kind: input, shape index: {}]
  %s2 = inlined_call_operand.vmem [shape: f32[1,128], index: 2, kind: output, shape index: {}]
  %s3 = sld [smem:[#allocation0]]
  $region22: #{net_forward.1} parent=0
    _
  %s5 = ssub.s32 1, %s3
  %s6 = scalar_select 0, %s5, %s3
  $region1: #{net_forward.1} parent=0
    #allocation2 [shape = 'u8[512]{0}', space=smem, size = 0x200, scoped, tag = 'input window, operand 0, single buffered']
    #allocation3 [shape = 's32[1]{0}', space=sflag, size = 0x4, scoped, tag = 'scoped memory for net_forward.1']
    %7 = vsyncpa [#allocation3], 0
    // Predicated region
    $region2: #{net_forward.1} parent=1 // pred_check
      _
    $region3: #{net_forward.1} parent=1 // pred_check_branch
      %9 = sbr.rel (0) target = $region5
    $region4: #{net_forward.1} parent=1 // pred_region
      %s11 = ssub.s32 16, 16
      %12 = vsyncadd [#allocation3], %s11
      %s14 = sshll.u32 %s0, 4
      %s15 = int_to_ptr.vmem [resolvable:$true] %s14
      %17 = dma.vmem_to_smem %s15, 16, [#allocation2], [#allocation3]
    $region5: #{net_forward.1} parent=1 // pred_fallthru
      _
    // Predicated region
    $region6: #{net_forward.1} parent=1 // pred_check
      _
    $region7: #{net_forward.1} parent=1 // pred_check_branch
      %19 = sbr.rel (0) target = $region9
    $region8: #{net_forward.1} parent=1 // pred_region
      _
    $region9: #{net_forward.1} parent=1 // pred_fallthru
      _
    // Predicated region
    $region10: #{net_forward.1} parent=1 // pred_check
      _
    $region11: #{net_forward.1} parent=1 // pred_check_branch
      %21 = sbr.rel (0) target = $region13
    $region12: #{net_forward.1} parent=1 // pred_region
      %22 = dma.done [#allocation3], 16
    $region13: #{net_forward.1} parent=1 // pred_fallthru
      _
    %23 = sfence
    %v24 = vld [vmem:[%s1] sm:$0x1]
    %s25 = sld [smem:[#allocation2]]
    %s26 = sld [smem:[#allocation2 + $0xa]]
    %s27 = sld [smem:[#allocation2 + $0x14]]
    %v28 = vstv %s25
    %v29 = vmul.f32 %v24, %v28
    %v30 = vstv %s26
    %v31 = vadd.f32 %v29, %v30
    %v32 = vmax.f32 %v31, 0.0
    %v33 = vstv %s27
    %v34 = vmul.f32 %v32, %v33
    %v35 = vadd.f32 %v34, 0.0
    %s36 = sld [smem:[#allocation2 + $0x1]]
    %s37 = sld [smem:[#allocation2 + $0xb]]
    %s38 = sld [smem:[#allocation2 + $0x15]]
    %v39 = vstv %s36
    %v40 = vmul.f32 %v24, %v39
    %v41 = vstv %s37
    %v42 = vadd.f32 %v40, %v41
    %v43 = vmax.f32 %v42, 0.0
    %v44 = vstv %s38
    %v45 = vmul.f32 %v43, %v44
    %v46 = vadd.f32 %v35, %v45
    %s47 = sld [smem:[#allocation2 + $0x2]]
    %s48 = sld [smem:[#allocation2 + $0xc]]
    %s49 = sld [smem:[#allocation2 + $0x16]]
    %v50 = vstv %s47
    %v51 = vmul.f32 %v24, %v50
    %v52 = vstv %s48
    %v53 = vadd.f32 %v51, %v52
    %v54 = vmax.f32 %v53, 0.0
    %v55 = vstv %s49
    %v56 = vmul.f32 %v54, %v55
    %v57 = vadd.f32 %v46, %v56
    %s58 = sld [smem:[#allocation2 + $0x3]]
    %s59 = sld [smem:[#allocation2 + $0xd]]
    %s60 = sld [smem:[#allocation2 + $0x17]]
    %v61 = vstv %s58
    %v62 = vmul.f32 %v24, %v61
    %v63 = vstv %s59
    %v64 = vadd.f32 %v62, %v63
    %v65 = vmax.f32 %v64, 0.0
    %v66 = vstv %s60
    %v67 = vmul.f32 %v65, %v66
    %v68 = vadd.f32 %v57, %v67
    %s69 = sld [smem:[#allocation2 + $0x4]]
    %s70 = sld [smem:[#allocation2 + $0xe]]
    %s71 = sld [smem:[#allocation2 + $0x18]]
    %v72 = vstv %s69
    %v73 = vmul.f32 %v24, %v72
    %v74 = vstv %s70
    %v75 = vadd.f32 %v73, %v74
    %v76 = vmax.f32 %v75, 0.0
    %v77 = vstv %s71
    %v78 = vmul.f32 %v76, %v77
    %v79 = vadd.f32 %v68, %v78
    %s80 = sld [smem:[#allocation2 + $0x5]]
    %s81 = sld [smem:[#allocation2 + $0xf]]
    %s82 = sld [smem:[#allocation2 + $0x19]]
    %v83 = vstv %s80
    %v84 = vmul.f32 %v24, %v83
    %v85 = vstv %s81
    %v86 = vadd.f32 %v84, %v85
    %v87 = vmax.f32 %v86, 0.0
    %v88 = vstv %s82
    %v89 = vmul.f32 %v87, %v88
    %v90 = vadd.f32 %v79, %v89
    %s91 = sld [smem:[#allocation2 + $0x6]]
    %s92 = sld [smem:[#allocation2 + $0x10]]
    %s93 = sld [smem:[#allocation2 + $0x1a]]
    %v94 = vstv %s91
    %v95 = vmul.f32 %v24, %v94
    %v96 = vstv %s92
    %v97 = vadd.f32 %v95, %v96
    %v98 = vmax.f32 %v97, 0.0
    %v99 = vstv %s93
    %v100 = vmul.f32 %v98, %v99
    %v101 = vadd.f32 %v90, %v100
    %s102 = sld [smem:[#allocation2 + $0x7]]
    %s103 = sld [smem:[#allocation2 + $0x11]]
    %s104 = sld [smem:[#allocation2 + $0x1b]]
    %v105 = vstv %s102
    %v106 = vmul.f32 %v24, %v105
    %v107 = vstv %s103
    %v108 = vadd.f32 %v106, %v107
    %v109 = vmax.f32 %v108, 0.0
    %v110 = vstv %s104
    %v111 = vmul.f32 %v109, %v110
    %v112 = vadd.f32 %v101, %v111
    %s113 = sld [smem:[#allocation2 + $0x8]]
    %s114 = sld [smem:[#allocation2 + $0x12]]
    %s115 = sld [smem:[#allocation2 + $0x1c]]
    %v116 = vstv %s113
    %v117 = vmul.f32 %v24, %v116
    %v118 = vstv %s114
    %v119 = vadd.f32 %v117, %v118
    %v120 = vmax.f32 %v119, 0.0
    %v121 = vstv %s115
    %v122 = vmul.f32 %v120, %v121
    %v123 = vadd.f32 %v112, %v122
    %s124 = sld [smem:[#allocation2 + $0x9]]
    %s125 = sld [smem:[#allocation2 + $0x13]]
    %s126 = sld [smem:[#allocation2 + $0x1d]]
    %v127 = vstv %s124
    %v128 = vmul.f32 %v24, %v127
    %v129 = vstv %s125
    %v130 = vadd.f32 %v128, %v129
    %v131 = vmax.f32 %v130, 0.0
    %v132 = vstv %s126
    %v133 = vmul.f32 %v131, %v132
    %v134 = vadd.f32 %v123, %v133
    %s135 = sld [smem:[#allocation2 + $0x1e]]
    %v136 = vstv %s135
    %v137 = vadd.f32 %v134, %v136
    %138 = vst [vmem:[%s2] sm:$0x1] %v137
    // Predicated region
    $region14: #{net_forward.1} parent=1 // pred_check
      _
    $region15: #{net_forward.1} parent=1 // pred_check_branch
      %140 = sbr.rel (0) target = $region17
    $region16: #{net_forward.1} parent=1 // pred_region
      _
    $region17: #{net_forward.1} parent=1 // pred_fallthru
      _
    // Predicated region
    $region18: #{net_forward.1} parent=1 // pred_check
      _
    $region19: #{net_forward.1} parent=1 // pred_check_branch
      %142 = sbr.rel (0) target = $region21
    $region20: #{net_forward.1} parent=1 // pred_region
      _
    $region21: #{net_forward.1} parent=1 // pred_fallthru
      _
    %143 = vsyncpa [#allocation3], 1

</llo_original>
